<compile_context>
chip_gen: v7x
topology: tpu7x:2x2x1
jax: 0.10.0
libtpu: 0.0.40
codegen_flags: <defaults>
</compile_context>

<pallas_src>
import jax
import jax.numpy as jnp
from jax.experimental import pallas as pl
from jax.experimental.pallas import tpu as pltpu

# ----------------------------- configuration --------------------------------
B = 2            # batch
C = 3            # image channels (RGB)
H = W = 16       # spatial
S = 8            # sequence length
HID = 32         # bert hidden size (small synthetic)
VOCAB = 64       # vocab size (small synthetic)
RESNET_FC = 32   # config.resnet_fc
BERT_FC = 32     # config.bert_fc
NUM_CLASSES = 4  # config.num_classes
OUT_PAD = 128    # lane-dense packed output width

_VMEM = pl.BlockSpec(memory_space=pltpu.MemorySpace.VMEM)


# ----------------------------- fused kernel ----------------------------------
def _mynet_kernel(tokens_ref, mask_ref, img_ref, emb_ref,
                  w_res_ref, b_res_ref, w_pool_ref, b_pool_ref,
                  w1_ref, b1_ref, out_ref):
    # tokens_ref: VMEM (B, S) int32       mask_ref:  VMEM (B, S) f32
    # img_ref:    VMEM (B, C, H*W) f32    emb_ref:   VMEM (VOCAB, HID) f32
    # w_res_ref:  (C, RESNET_FC)          b_res_ref: (1, RESNET_FC)
    # w_pool_ref: (HID, BERT_FC)          b_pool_ref:(1, BERT_FC)
    # w1_ref:     (RESNET_FC+BERT_FC, NUM_CLASSES)   b1_ref: (1, NUM_CLASSES)
    # out_ref:    VMEM (B, OUT_PAD) f32  -- [img_feat | logits | zero pad]

    # ---------------- image branch: global avg pool + FC ---------------------
    pooled = jnp.mean(img_ref[...], axis=2)                       # (B, C)
    w_res = w_res_ref[...]                                        # read once
    # contraction depth C=3 -> three VPU FMAs instead of a padded MXU pass
    img_feat = jnp.broadcast_to(b_res_ref[...], (B, RESNET_FC))
    for c in range(C):                                            # static unroll
        img_feat = img_feat + pooled[:, c:c + 1] * w_res[c:c + 1, :]

    # -------- text branch: one-hot (bag-of-words) embedding + pooler ---------
    # weights[b, v] = sum_s mask[b, s] * (tokens[b, s] == v); OOB tokens
    # contribute zero (graceful), no per-token scalar gather chain.
    tok = tokens_ref[...]                                         # (B, S) int32
    msk = mask_ref[...]                                           # (B, S) f32
    vocab_ids = jax.lax.broadcasted_iota(jnp.int32, (B, S, VOCAB), 2)
    onehot = (tok[:, :, None] == vocab_ids).astype(jnp.float32)   # (B, S, VOCAB)
    bow = jnp.sum(onehot * msk[:, :, None], axis=1)               # (B, VOCAB)
    denom = jnp.maximum(jnp.sum(msk, axis=1, keepdims=True), 1.0) # (B, 1)
    mean = jnp.dot(bow, emb_ref[...],
                   preferred_element_type=jnp.float32) / denom    # (B, HID)
    pooled_txt = jnp.tanh(
        jnp.dot(mean, w_pool_ref[...],
                preferred_element_type=jnp.float32) + b_pool_ref[...])

    # self.drop(pooled): eval-mode dropout == identity

    # ---------------- fusion head: split dot over pre-concat w1 --------------
    # fea = concat([img_feat, pooled_txt]) never materializes; static ref
    # slices of w1 are free.
    logits = (jnp.dot(img_feat, w1_ref[:RESNET_FC, :],
                      preferred_element_type=jnp.float32)
              + jnp.dot(pooled_txt, w1_ref[RESNET_FC:, :],
                        preferred_element_type=jnp.float32)
              + b1_ref[...])
    mmax = jnp.max(logits, axis=1, keepdims=True)
    e = jnp.exp(logits - mmax)
    probs = e / jnp.sum(e, axis=1, keepdims=True)                 # exact softmax

    # -------- lane-dense packed output: single unmasked full-width store -----
    pad = jnp.zeros((B, OUT_PAD - RESNET_FC - NUM_CLASSES), jnp.float32)
    out_ref[...] = jnp.concatenate([img_feat, probs, pad],
                                   axis=1).astype(out_ref.dtype)


# ----------------------------- wrapper ---------------------------------------
def mynet_forward(inx, params):
    img, tokens, mask = inx
    img_flat = img.reshape(B, C, H * W)
    mask_f = mask.astype(jnp.float32)

    packed = pl.pallas_call(
        _mynet_kernel,
        out_shape=jax.ShapeDtypeStruct((B, OUT_PAD), jnp.float32),
        in_specs=[_VMEM] * 10,
        out_specs=_VMEM,
    )(tokens, mask_f, img_flat, params["emb"],
      params["w_res"], params["b_res"],
      params["w_pool"], params["b_pool"],
      params["w1"], params["b1"])

    img_feat = packed[:, :RESNET_FC]
    logits = packed[:, RESNET_FC:RESNET_FC + NUM_CLASSES]
    return img_feat, logits


# ----------------------------- pure-JAX reference -----------------------------
def _ref_forward(img, tokens, mask, params):
    pooled = jnp.mean(img.reshape(B, C, H * W), axis=2)
    img_feat = pooled @ params["w_res"] + params["b_res"]
    emb = jnp.take(params["emb"], tokens, axis=0)
    m = mask.astype(jnp.float32)
    denom = jnp.maximum(jnp.sum(m, axis=1, keepdims=True), 1.0)
    mean = jnp.sum(emb * m[:, :, None], axis=1) / denom
    pooled_txt = jnp.tanh(mean @ params["w_pool"] + params["b_pool"])
    fea = jnp.concatenate([img_feat, pooled_txt], axis=1)
    logits = jax.nn.softmax(fea @ params["w1"] + params["b1"], axis=1)
    return img_feat, logits


# ----------------------------- main -------------------------------------------
if __name__ == "__main__":
    key = jax.random.PRNGKey(0)
    keys = jax.random.split(key, 10)

    # deterministic synthetic parameters (shapes from module __init__)
    w1_img = jax.random.normal(keys[5], (RESNET_FC, NUM_CLASSES), jnp.float32) * 0.1
    w1_txt = jax.random.normal(keys[6], (BERT_FC, NUM_CLASSES), jnp.float32) * 0.1
    params = {
        "w_res":  jax.random.normal(keys[0], (C, RESNET_FC), jnp.float32) * 0.1,
        "b_res":  jax.random.normal(keys[1], (1, RESNET_FC), jnp.float32) * 0.1,
        "emb":    jax.random.normal(keys[2], (VOCAB, HID), jnp.float32) * 0.1,
        "w_pool": jax.random.normal(keys[3], (HID, BERT_FC), jnp.float32) * 0.1,
        "b_pool": jax.random.normal(keys[4], (1, BERT_FC), jnp.float32) * 0.1,
        # fc_1: Linear(resnet_fc + bert_fc, num_classes), weight pre-concatenated
        # host-side so the head stays a pair of static-slice MXU dots.
        "w1":     jnp.concatenate([w1_img, w1_txt], axis=0),
        "b1":     jax.random.normal(keys[7], (1, NUM_CLASSES), jnp.float32) * 0.1,
    }

    # deterministic example inputs
    img = jax.random.normal(keys[8], (B, C, H, W), jnp.float32)        # NCHW
    tokens = jax.random.randint(keys[9], (B, S), 0, VOCAB, jnp.int32)
    mask = jnp.ones((B, S), jnp.int32).at[1, S // 2:].set(0)           # ragged mask

    img_feat, logits = mynet_forward((img, tokens, mask), params)
    jax.block_until_ready((img_feat, logits))

    assert img_feat.shape == (B, RESNET_FC)
    assert logits.shape == (B, NUM_CLASSES)
    assert bool(jnp.allclose(jnp.sum(logits, axis=1), 1.0, atol=1e-5))

    ref_img, ref_logits = _ref_forward(img, tokens, mask, params)
    assert bool(jnp.allclose(img_feat, ref_img, rtol=5e-3, atol=5e-3))
    assert bool(jnp.allclose(logits, ref_logits, rtol=5e-3, atol=5e-3))

    print("KERNEL_OK")
</pallas_src>

<mosaic_0001>
module attributes {stable_mosaic.version = 11 : i64} {
  func.func @_mynet_kernel(%arg0: memref<2x8xi32, #tpu.memory_space<vmem>>, %arg1: memref<2x8xf32, #tpu.memory_space<vmem>>, %arg2: memref<2x3x256xf32, #tpu.memory_space<vmem>>, %arg3: memref<64x32xf32, #tpu.memory_space<vmem>>, %arg4: memref<3x32xf32, #tpu.memory_space<vmem>>, %arg5: memref<1x32xf32, #tpu.memory_space<vmem>>, %arg6: memref<32x32xf32, #tpu.memory_space<vmem>>, %arg7: memref<1x32xf32, #tpu.memory_space<vmem>>, %arg8: memref<64x4xf32, #tpu.memory_space<vmem>>, %arg9: memref<1x4xf32, #tpu.memory_space<vmem>>, %arg10: memref<2x128xf32, #tpu.memory_space<vmem>>) attributes {dimension_semantics = [], scalar_prefetch = 0 : i64, scratch_operands = 0 : i64, tpu.core_type = #tpu.core_type<tc>} {
    %c0 = arith.constant 0 : index
    %c0_0 = arith.constant 0 : index
    %c0_1 = arith.constant 0 : index
    %0 = vector.load %arg2[%c0, %c0_0, %c0_1] : memref<2x3x256xf32, #tpu.memory_space<vmem>>, vector<2x3x256xf32>
    %cst = arith.constant dense<0.000000e+00> : vector<2x3xf32>
    %1 = vector.multi_reduction <add>, %0, %cst [2] : vector<2x3x256xf32> to vector<2x3xf32>
    %cst_2 = arith.constant 2.560000e+02 : f32
    %2 = vector.broadcast %cst_2 : f32 to vector<2x3xf32>
    %3 = arith.divf %1, %2 : vector<2x3xf32>
    %c0_3 = arith.constant 0 : index
    %c0_4 = arith.constant 0 : index
    %4 = vector.load %arg4[%c0_3, %c0_4] : memref<3x32xf32, #tpu.memory_space<vmem>>, vector<3x32xf32>
    %c0_5 = arith.constant 0 : index
    %c0_6 = arith.constant 0 : index
    %5 = vector.load %arg5[%c0_5, %c0_6] : memref<1x32xf32, #tpu.memory_space<vmem>>, vector<1x32xf32>
    %6 = vector.shape_cast %5 : vector<1x32xf32> to vector<1x32xf32>
    %7 = vector.broadcast %6 : vector<1x32xf32> to vector<2x32xf32>
    %8 = vector.extract_strided_slice %3 {offsets = [0, 0], sizes = [2, 1], strides = [1, 1]} : vector<2x3xf32> to vector<2x1xf32>
    %9 = vector.extract_strided_slice %4 {offsets = [0, 0], sizes = [1, 32], strides = [1, 1]} : vector<3x32xf32> to vector<1x32xf32>
    %10 = vector.broadcast %8 : vector<2x1xf32> to vector<2x32xf32>
    %11 = vector.broadcast %9 : vector<1x32xf32> to vector<2x32xf32>
    %12 = arith.mulf %10, %11 : vector<2x32xf32>
    %13 = arith.addf %7, %12 : vector<2x32xf32>
    %14 = vector.extract_strided_slice %3 {offsets = [0, 1], sizes = [2, 1], strides = [1, 1]} : vector<2x3xf32> to vector<2x1xf32>
    %15 = vector.extract_strided_slice %4 {offsets = [1, 0], sizes = [1, 32], strides = [1, 1]} : vector<3x32xf32> to vector<1x32xf32>
    %16 = vector.broadcast %14 : vector<2x1xf32> to vector<2x32xf32>
    %17 = vector.broadcast %15 : vector<1x32xf32> to vector<2x32xf32>
    %18 = arith.mulf %16, %17 : vector<2x32xf32>
    %19 = arith.addf %13, %18 : vector<2x32xf32>
    %20 = vector.extract_strided_slice %3 {offsets = [0, 2], sizes = [2, 1], strides = [1, 1]} : vector<2x3xf32> to vector<2x1xf32>
    %21 = vector.extract_strided_slice %4 {offsets = [2, 0], sizes = [1, 32], strides = [1, 1]} : vector<3x32xf32> to vector<1x32xf32>
    %22 = vector.broadcast %20 : vector<2x1xf32> to vector<2x32xf32>
    %23 = vector.broadcast %21 : vector<1x32xf32> to vector<2x32xf32>
    %24 = arith.mulf %22, %23 : vector<2x32xf32>
    %25 = arith.addf %19, %24 : vector<2x32xf32>
    %c0_7 = arith.constant 0 : index
    %c0_8 = arith.constant 0 : index
    %26 = vector.load %arg0[%c0_7, %c0_8] : memref<2x8xi32, #tpu.memory_space<vmem>>, vector<2x8xi32>
    %c0_9 = arith.constant 0 : index
    %c0_10 = arith.constant 0 : index
    %27 = vector.load %arg1[%c0_9, %c0_10] : memref<2x8xf32, #tpu.memory_space<vmem>>, vector<2x8xf32>
    %28 = tpu.iota {dimensions = array<i32: 2>} : vector<2x8x64xi32>
    %29 = vector.shape_cast %26 : vector<2x8xi32> to vector<2x8x1xi32>
    %30 = vector.broadcast %29 : vector<2x8x1xi32> to vector<2x8x64xi32>
    %31 = arith.cmpi eq, %30, %28 : vector<2x8x64xi32>
    %32 = arith.extui %31 : vector<2x8x64xi1> to vector<2x8x64xi32>
    %33 = arith.sitofp %32 : vector<2x8x64xi32> to vector<2x8x64xf32>
    %34 = vector.shape_cast %27 : vector<2x8xf32> to vector<2x8x1xf32>
    %35 = vector.broadcast %34 : vector<2x8x1xf32> to vector<2x8x64xf32>
    %36 = arith.mulf %33, %35 : vector<2x8x64xf32>
    %cst_11 = arith.constant dense<0.000000e+00> : vector<2x64xf32>
    %37 = vector.multi_reduction <add>, %36, %cst_11 [1] : vector<2x8x64xf32> to vector<2x64xf32>
    %cst_12 = arith.constant dense<0.000000e+00> : vector<2xf32>
    %38 = vector.multi_reduction <add>, %27, %cst_12 [1] : vector<2x8xf32> to vector<2xf32>
    %39 = vector.shape_cast %38 : vector<2xf32> to vector<2x1xf32>
    %cst_13 = arith.constant 1.000000e+00 : f32
    %40 = vector.broadcast %cst_13 : f32 to vector<2x1xf32>
    %41 = arith.maximumf %39, %40 : vector<2x1xf32>
    %c0_14 = arith.constant 0 : index
    %c0_15 = arith.constant 0 : index
    %42 = vector.load %arg3[%c0_14, %c0_15] : memref<64x32xf32, #tpu.memory_space<vmem>>, vector<64x32xf32>
    %cst_16 = arith.constant dense<0.000000e+00> : vector<2x32xf32>
    %43 = tpu.matmul %37, %42, %cst_16 {dimension_numbers = #tpu.dot_dimension_numbers<[1], [0], [0], [1], [0, 0, 1, 1], [], []>} : vector<2x64xf32>, vector<64x32xf32>, vector<2x32xf32> -> vector<2x32xf32>
    %44 = vector.broadcast %41 : vector<2x1xf32> to vector<2x32xf32>
    %45 = arith.divf %43, %44 : vector<2x32xf32>
    %c0_17 = arith.constant 0 : index
    %c0_18 = arith.constant 0 : index
    %46 = vector.load %arg6[%c0_17, %c0_18] : memref<32x32xf32, #tpu.memory_space<vmem>>, vector<32x32xf32>
    %cst_19 = arith.constant dense<0.000000e+00> : vector<2x32xf32>
    %47 = tpu.matmul %45, %46, %cst_19 {dimension_numbers = #tpu.dot_dimension_numbers<[1], [0], [0], [1], [0, 0, 1, 1], [], []>} : vector<2x32xf32>, vector<32x32xf32>, vector<2x32xf32> -> vector<2x32xf32>
    %c0_20 = arith.constant 0 : index
    %c0_21 = arith.constant 0 : index
    %48 = vector.load %arg7[%c0_20, %c0_21] : memref<1x32xf32, #tpu.memory_space<vmem>>, vector<1x32xf32>
    %49 = vector.broadcast %48 : vector<1x32xf32> to vector<2x32xf32>
    %50 = arith.addf %47, %49 : vector<2x32xf32>
    %51 = math.tanh %50 : vector<2x32xf32>
    %c0_22 = arith.constant 0 : index
    %c0_23 = arith.constant 0 : index
    %52 = vector.load %arg8[%c0_22, %c0_23] : memref<64x4xf32, #tpu.memory_space<vmem>>, vector<32x4xf32>
    %cst_24 = arith.constant dense<0.000000e+00> : vector<2x4xf32>
    %53 = tpu.matmul %25, %52, %cst_24 {dimension_numbers = #tpu.dot_dimension_numbers<[1], [0], [0], [1], [0, 0, 1, 1], [], []>} : vector<2x32xf32>, vector<32x4xf32>, vector<2x4xf32> -> vector<2x4xf32>
    %c32 = arith.constant 32 : index
    %c0_25 = arith.constant 0 : index
    %54 = vector.load %arg8[%c32, %c0_25] : memref<64x4xf32, #tpu.memory_space<vmem>>, vector<32x4xf32>
    %cst_26 = arith.constant dense<0.000000e+00> : vector<2x4xf32>
    %55 = tpu.matmul %51, %54, %cst_26 {dimension_numbers = #tpu.dot_dimension_numbers<[1], [0], [0], [1], [0, 0, 1, 1], [], []>} : vector<2x32xf32>, vector<32x4xf32>, vector<2x4xf32> -> vector<2x4xf32>
    %56 = arith.addf %53, %55 : vector<2x4xf32>
    %c0_27 = arith.constant 0 : index
    %c0_28 = arith.constant 0 : index
    %57 = vector.load %arg9[%c0_27, %c0_28] : memref<1x4xf32, #tpu.memory_space<vmem>>, vector<1x4xf32>
    %58 = vector.broadcast %57 : vector<1x4xf32> to vector<2x4xf32>
    %59 = arith.addf %56, %58 : vector<2x4xf32>
    %cst_29 = arith.constant dense<0xFF800000> : vector<2xf32>
    %60 = vector.multi_reduction <maximumf>, %59, %cst_29 [1] : vector<2x4xf32> to vector<2xf32>
    %61 = vector.shape_cast %60 : vector<2xf32> to vector<2x1xf32>
    %62 = vector.broadcast %61 : vector<2x1xf32> to vector<2x4xf32>
    %63 = arith.subf %59, %62 : vector<2x4xf32>
    %64 = math.exp %63 : vector<2x4xf32>
    %cst_30 = arith.constant dense<0.000000e+00> : vector<2xf32>
    %65 = vector.multi_reduction <add>, %64, %cst_30 [1] : vector<2x4xf32> to vector<2xf32>
    %66 = vector.shape_cast %65 : vector<2xf32> to vector<2x1xf32>
    %67 = vector.broadcast %66 : vector<2x1xf32> to vector<2x4xf32>
    %68 = arith.divf %64, %67 : vector<2x4xf32>
    %cst_31 = arith.constant 0.000000e+00 : f32
    %69 = vector.broadcast %cst_31 : f32 to vector<2x92xf32>
    %70 = tpu.concatenate %25, %68, %69 in 1 : vector<2x32xf32>, vector<2x4xf32>, vector<2x92xf32> -> vector<2x128xf32>
    %c0_32 = arith.constant 0 : index
    %c0_33 = arith.constant 0 : index
    %71 = vector.load %arg10[%c0_32, %c0_33] : memref<2x128xf32, #tpu.memory_space<vmem>>, vector<2x128xf32>
    tpu.vector_store %arg10[%c0_32, %c0_33], %70 {strides = array<i32>} : memref<2x128xf32, #tpu.memory_space<vmem>>, vector<2x128xf32>,
    return
  }
}

</mosaic_0001>

<llo_original>
// kernel: tpu_custom_call.1
$region0: #{tpu_custom_call.1}
  #allocation0 [shape = 'u32[]', space=smem, size = 0x4, offset = 0x4, fixed_abs, tag = 'smem constant byte address 0x4 - core index']
  #allocation1 [shape = 'u32[144,128]{1,0:T(1,128)}', space=vmem, size = 0x12000, scoped, tag = 'internal scratch']
  %s0 = inlined_call_operand.vmem [shape: s32[2,8], index: 0, kind: input, shape index: {}]
  %s1 = inlined_call_operand.vmem [shape: f32[2,8], index: 1, kind: input, shape index: {}]
  %s2 = inlined_call_operand.vmem [shape: f32[2,3,256], index: 2, kind: input, shape index: {}]
  %s3 = inlined_call_operand.vmem [shape: f32[64,32], index: 3, kind: input, shape index: {}]
  %s4 = inlined_call_operand.vmem [shape: f32[3,32], index: 4, kind: input, shape index: {}]
  %s5 = inlined_call_operand.vmem [shape: f32[1,32], index: 5, kind: input, shape index: {}]
  %s6 = inlined_call_operand.vmem [shape: f32[32,32], index: 6, kind: input, shape index: {}]
  %s7 = inlined_call_operand.vmem [shape: f32[1,32], index: 7, kind: input, shape index: {}]
  %s8 = inlined_call_operand.vmem [shape: f32[64,4], index: 8, kind: input, shape index: {}]
  %s9 = inlined_call_operand.vmem [shape: f32[1,4], index: 9, kind: input, shape index: {}]
  %s10 = inlined_call_operand.hbm [shape: f32[2,128], index: 10, kind: output, shape index: {}]
  %s11 = sld [smem:[#allocation0]]
  $region50: #{tpu_custom_call.1} parent=0
    _
  %s13 = ssub.s32 1, %s11
  %s14 = scalar_select 0, %s13, %s11
  $region1: #{tpu_custom_call.1} parent=0
    #allocation2 [shape = 'u8[1024]{0}', space=vmem, size = 0x400, scoped, tag = 'output window, operand 0, single buffered']
    #allocation3 [shape = 's32[1]{0}', space=sflag, size = 0x4, scoped, tag = 'scoped memory for tpu_custom_call.1']
    %15 = vsyncpa [#allocation3], 0
    // Predicated region
    $region2: #{tpu_custom_call.1} parent=1 // pred_check
      _
    $region3: #{tpu_custom_call.1} parent=1 // pred_check_branch
      %17 = sbr.rel (0) target = $region5
    $region4: #{tpu_custom_call.1} parent=1 // pred_region
      _
    $region5: #{tpu_custom_call.1} parent=1 // pred_fallthru
      _
    // Predicated region
    $region6: #{tpu_custom_call.1} parent=1 // pred_check
      _
    $region7: #{tpu_custom_call.1} parent=1 // pred_check_branch
      %19 = sbr.rel (0) target = $region9
    $region8: #{tpu_custom_call.1} parent=1 // pred_region
      _
    $region9: #{tpu_custom_call.1} parent=1 // pred_fallthru
      _
    // Predicated region
    $region10: #{tpu_custom_call.1} parent=1 // pred_check
      _
    $region11: #{tpu_custom_call.1} parent=1 // pred_check_branch
      %21 = sbr.rel (0) target = $region13
    $region12: #{tpu_custom_call.1} parent=1 // pred_region
      _
    $region13: #{tpu_custom_call.1} parent=1 // pred_fallthru
      _
    // Predicated region
    $region14: #{tpu_custom_call.1} parent=1 // pred_check
      _
    $region15: #{tpu_custom_call.1} parent=1 // pred_check_branch
      %23 = sbr.rel (0) target = $region17
    $region16: #{tpu_custom_call.1} parent=1 // pred_region
      _
    $region17: #{tpu_custom_call.1} parent=1 // pred_fallthru
      _
    // Predicated region
    $region18: #{tpu_custom_call.1} parent=1 // pred_check
      _
    $region19: #{tpu_custom_call.1} parent=1 // pred_check_branch
      %25 = sbr.rel (0) target = $region21
    $region20: #{tpu_custom_call.1} parent=1 // pred_region
      _
    $region21: #{tpu_custom_call.1} parent=1 // pred_fallthru
      _
    // Predicated region
    $region22: #{tpu_custom_call.1} parent=1 // pred_check
      _
    $region23: #{tpu_custom_call.1} parent=1 // pred_check_branch
      %27 = sbr.rel (0) target = $region25
    $region24: #{tpu_custom_call.1} parent=1 // pred_region
      _
    $region25: #{tpu_custom_call.1} parent=1 // pred_fallthru
      _
    // Predicated region
    $region26: #{tpu_custom_call.1} parent=1 // pred_check
      _
    $region27: #{tpu_custom_call.1} parent=1 // pred_check_branch
      %29 = sbr.rel (0) target = $region29
    $region28: #{tpu_custom_call.1} parent=1 // pred_region
      _
    $region29: #{tpu_custom_call.1} parent=1 // pred_fallthru
      _
    // Predicated region
    $region30: #{tpu_custom_call.1} parent=1 // pred_check
      _
    $region31: #{tpu_custom_call.1} parent=1 // pred_check_branch
      %31 = sbr.rel (0) target = $region33
    $region32: #{tpu_custom_call.1} parent=1 // pred_region
      _
    $region33: #{tpu_custom_call.1} parent=1 // pred_fallthru
      _
    // Predicated region
    $region34: #{tpu_custom_call.1} parent=1 // pred_check
      _
    $region35: #{tpu_custom_call.1} parent=1 // pred_check_branch
      %33 = sbr.rel (0) target = $region37
    $region36: #{tpu_custom_call.1} parent=1 // pred_region
      _
    $region37: #{tpu_custom_call.1} parent=1 // pred_fallthru
      _
    // Predicated region
    $region38: #{tpu_custom_call.1} parent=1 // pred_check
      _
    $region39: #{tpu_custom_call.1} parent=1 // pred_check_branch
      %35 = sbr.rel (0) target = $region41
    $region40: #{tpu_custom_call.1} parent=1 // pred_region
      _
    $region41: #{tpu_custom_call.1} parent=1 // pred_fallthru
      _
    %v36 = vld [vmem:[%s2] sm:$0x77]
    %v37 = vld [vmem:[%s2 + $0x8] sm:$0x77]
    %v40 = vcombine.high %v36, %v36
    %v41 = vcombine.high %v37, %v37
    %vm44 = vcmask 1042432
    %v45 = vsel %vm44, %v36, 0.0
    %v46 = vsel %vm44, %v40, 0.0
    %v47 = vadd.f32 %v45, %v46
    %48 = vadd.xlane.f32.xlu0 %v47
    %v49 = vpop.xlane.xlu0 %48
    %v50 = vsel %vm44, %v37, 0.0
    %v51 = vsel %vm44, %v41, 0.0
    %v52 = vadd.f32 %v50, %v51
    %53 = vadd.xlane.f32.xlu0 %v52
    %v54 = vpop.xlane.xlu0 %53
    %v55 = vrcp.pop 256.0
    %v56 = vmul.f32 %v49, %v55
    %v57 = vmul.f32 %v54, %v55
    %v58 = vld [vmem:[%s4] sm:$0x7]
    %v59 = vld [vmem:[%s5] sm:$0x1]
    %v61 = vlaneseq
    %v62 = vshrl.u32 %v61, 7
    %v63 = vsub.s32 0, %v62
    %v64 = vrot.slane %v59, %v63
    %v66 = vlaneseq
    %v67 = vshrl.u32 %v66, 7
    %v68 = vsub.s32 0, %v67
    %v69 = vrot.slane %v56, %v68
    %v70 = vlaneseq
    %v71 = vshrl.u32 %v70, 7
    %v72 = vsub.s32 0, %v71
    %v73 = vrot.slane %v57, %v72
    %v74 = vlaneseq
    %v75 = vshrl.u32 %v74, 7
    %v76 = vsub.s32 0, %v75
    %v77 = vrot.slane %v58, %v76
    %80 = vbcast.lane.b32.xlu0 %v77, 256
    %v81 = vpop.permute.xlu0 %80
    %s83 = sor.u32 256, 8
    %84 = vbcast.lane.b32.xlu0 %v77, %s83
    %v85 = vpop.permute.xlu0 %84
    %s87 = sor.u32 256, 16
    %88 = vbcast.lane.b32.xlu0 %v77, %s87
    %v89 = vpop.permute.xlu0 %88
    %s91 = sor.u32 256, 24
    %92 = vbcast.lane.b32.xlu0 %v77, %s91
    %v93 = vpop.permute.xlu0 %92
    %v98 = vmul.f32 %v69, %v81
    %v99 = vmul.f32 %v69, %v85
    %v100 = vmul.f32 %v69, %v89
    %v101 = vmul.f32 %v69, %v93
    %v102 = vmul.f32 %v73, %v81
    %v103 = vmul.f32 %v73, %v85
    %v104 = vmul.f32 %v73, %v89
    %v105 = vmul.f32 %v73, %v93
    %114 = vset.pattern.permute.xlu0 0
    %115 = vperm.xlu0 %114, %v98
    %v116 = vpop.permute.xlu0 %115
    %117 = vset.pattern.permute.xlu0 0
    %118 = vperm.xlu0 %117, %v99
    %v119 = vpop.permute.xlu0 %118
    %120 = vset.pattern.permute.xlu0 0
    %121 = vperm.xlu0 %120, %v100
    %v122 = vpop.permute.xlu0 %121
    %123 = vset.pattern.permute.xlu0 0
    %124 = vperm.xlu0 %123, %v101
    %v125 = vpop.permute.xlu0 %124
    %126 = vset.pattern.permute.xlu0 0
    %127 = vperm.xlu0 %126, %v102
    %v128 = vpop.permute.xlu0 %127
    %129 = vset.pattern.permute.xlu0 0
    %130 = vperm.xlu0 %129, %v103
    %v131 = vpop.permute.xlu0 %130
    %132 = vset.pattern.permute.xlu0 0
    %133 = vperm.xlu0 %132, %v104
    %v134 = vpop.permute.xlu0 %133
    %135 = vset.pattern.permute.xlu0 0
    %136 = vperm.xlu0 %135, %v105
    %v137 = vpop.permute.xlu0 %136
    %v138 = vlaneseq
    %v139 = vand.u32 %v138, 127
    %v140 = vlaneseq
    %v141 = vshrl.u32 %v140, 7
    %v142 = vsub.s32 %v139, %v141
    %v143 = vrot.slane %v116, %v142
    %v144 = vadd.s32 %v139, 4294967288
    %v145 = vlaneseq
    %v146 = vshrl.u32 %v145, 7
    %v147 = vsub.s32 %v144, %v146
    %v148 = vrot.slane %v119, %v147
    %vm149 = vcmask 130112
    %v150 = vsel %vm149, %v148, %v143
    %v151 = vadd.s32 %v139, 4294967280
    %v152 = vlaneseq
    %v153 = vshrl.u32 %v152, 7
    %v154 = vsub.s32 %v151, %v153
    %v155 = vrot.slane %v122, %v154
    %vm156 = vcmask 195712
    %v157 = vsel %vm156, %v155, %v150
    %v158 = vadd.s32 %v139, 4294967272
    %v159 = vlaneseq
    %v160 = vshrl.u32 %v159, 7
    %v161 = vsub.s32 %v158, %v160
    %v162 = vrot.slane %v125, %v161
    %vm163 = vcmask 261312
    %v164 = vsel %vm163, %v162, %v157
    %v165 = vlaneseq
    %v166 = vshrl.u32 %v165, 7
    %v167 = vsub.s32 %v139, %v166
    %v168 = vrot.slane %v128, %v167
    %v169 = vlaneseq
    %v170 = vshrl.u32 %v169, 7
    %v171 = vsub.s32 %v144, %v170
    %v172 = vrot.slane %v131, %v171
    %v173 = vsel %vm149, %v172, %v168
    %v174 = vlaneseq
    %v175 = vshrl.u32 %v174, 7
    %v176 = vsub.s32 %v151, %v175
    %v177 = vrot.slane %v134, %v176
    %v178 = vsel %vm156, %v177, %v173
    %v179 = vlaneseq
    %v180 = vshrl.u32 %v179, 7
    %v181 = vsub.s32 %v158, %v180
    %v182 = vrot.slane %v137, %v181
    %v183 = vsel %vm163, %v182, %v178
    %vm184 = vcmask 1041409
    %v185 = vsel %vm184, %v183, %v164
    %v187 = vadd.f32 %v64, %v185
    %v188 = vlaneseq
    %v189 = vshrl.u32 %v188, 7
    %v190 = vsub.s32 1, %v189
    %v191 = vrot.slane %v56, %v190
    %v192 = vlaneseq
    %v193 = vshrl.u32 %v192, 7
    %v194 = vsub.s32 1, %v193
    %v195 = vrot.slane %v57, %v194
    %v196 = vlaneseq
    %v197 = vshrl.u32 %v196, 7
    %v198 = vsub.s32 1, %v197
    %v199 = vrot.slane %v58, %v198
    %202 = vbcast.lane.b32.xlu0 %v199, 256
    %v203 = vpop.permute.xlu0 %202
    %s205 = sor.u32 256, 8
    %206 = vbcast.lane.b32.xlu0 %v199, %s205
    %v207 = vpop.permute.xlu0 %206
    %s209 = sor.u32 256, 16
    %210 = vbcast.lane.b32.xlu0 %v199, %s209
    %v211 = vpop.permute.xlu0 %210
    %s213 = sor.u32 256, 24
    %214 = vbcast.lane.b32.xlu0 %v199, %s213
    %v215 = vpop.permute.xlu0 %214
    %v220 = vmul.f32 %v191, %v203
    %v221 = vmul.f32 %v191, %v207
    %v222 = vmul.f32 %v191, %v211
    %v223 = vmul.f32 %v191, %v215
    %v224 = vmul.f32 %v195, %v203
    %v225 = vmul.f32 %v195, %v207
    %v226 = vmul.f32 %v195, %v211
    %v227 = vmul.f32 %v195, %v215
    %236 = vset.pattern.permute.xlu0 0
    %237 = vperm.xlu0 %236, %v220
    %v238 = vpop.permute.xlu0 %237
    %239 = vset.pattern.permute.xlu0 0
    %240 = vperm.xlu0 %239, %v221
    %v241 = vpop.permute.xlu0 %240
    %242 = vset.pattern.permute.xlu0 0
    %243 = vperm.xlu0 %242, %v222
    %v244 = vpop.permute.xlu0 %243
    %245 = vset.pattern.permute.xlu0 0
    %246 = vperm.xlu0 %245, %v223
    %v247 = vpop.permute.xlu0 %246
    %248 = vset.pattern.permute.xlu0 0
    %249 = vperm.xlu0 %248, %v224
    %v250 = vpop.permute.xlu0 %249
    %251 = vset.pattern.permute.xlu0 0
    %252 = vperm.xlu0 %251, %v225
    %v253 = vpop.permute.xlu0 %252
    %254 = vset.pattern.permute.xlu0 0
    %255 = vperm.xlu0 %254, %v226
    %v256 = vpop.permute.xlu0 %255
    %257 = vset.pattern.permute.xlu0 0
    %258 = vperm.xlu0 %257, %v227
    %v259 = vpop.permute.xlu0 %258
    %v260 = vlaneseq
    %v261 = vshrl.u32 %v260, 7
    %v262 = vsub.s32 %v139, %v261
    %v263 = vrot.slane %v238, %v262
    %v264 = vlaneseq
    %v265 = vshrl.u32 %v264, 7
    %v266 = vsub.s32 %v144, %v265
    %v267 = vrot.slane %v241, %v266
    %v268 = vsel %vm149, %v267, %v263
    %v269 = vlaneseq
    %v270 = vshrl.u32 %v269, 7
    %v271 = vsub.s32 %v151, %v270
    %v272 = vrot.slane %v244, %v271
    %v273 = vsel %vm156, %v272, %v268
    %v274 = vlaneseq
    %v275 = vshrl.u32 %v274, 7
    %v276 = vsub.s32 %v158, %v275
    %v277 = vrot.slane %v247, %v276
    %v278 = vsel %vm163, %v277, %v273
    %v279 = vlaneseq
    %v280 = vshrl.u32 %v279, 7
    %v281 = vsub.s32 %v139, %v280
    %v282 = vrot.slane %v250, %v281
    %v283 = vlaneseq
    %v284 = vshrl.u32 %v283, 7
    %v285 = vsub.s32 %v144, %v284
    %v286 = vrot.slane %v253, %v285
    %v287 = vsel %vm149, %v286, %v282
    %v288 = vlaneseq
    %v289 = vshrl.u32 %v288, 7
    %v290 = vsub.s32 %v151, %v289
    %v291 = vrot.slane %v256, %v290
    %v292 = vsel %vm156, %v291, %v287
    %v293 = vlaneseq
    %v294 = vshrl.u32 %v293, 7
    %v295 = vsub.s32 %v158, %v294
    %v296 = vrot.slane %v259, %v295
    %v297 = vsel %vm163, %v296, %v292
    %v298 = vsel %vm184, %v297, %v278
    %v300 = vadd.f32 %v187, %v298
    %v301 = vlaneseq
    %v302 = vshrl.u32 %v301, 7
    %v303 = vsub.s32 2, %v302
    %v304 = vrot.slane %v56, %v303
    %v305 = vlaneseq
    %v306 = vshrl.u32 %v305, 7
    %v307 = vsub.s32 2, %v306
    %v308 = vrot.slane %v57, %v307
    %v309 = vlaneseq
    %v310 = vshrl.u32 %v309, 7
    %v311 = vsub.s32 2, %v310
    %v312 = vrot.slane %v58, %v311
    %315 = vbcast.lane.b32.xlu0 %v312, 256
    %v316 = vpop.permute.xlu0 %315
    %s318 = sor.u32 256, 8
    %319 = vbcast.lane.b32.xlu0 %v312, %s318
    %v320 = vpop.permute.xlu0 %319
    %s322 = sor.u32 256, 16
    %323 = vbcast.lane.b32.xlu0 %v312, %s322
    %v324 = vpop.permute.xlu0 %323
    %s326 = sor.u32 256, 24
    %327 = vbcast.lane.b32.xlu0 %v312, %s326
    %v328 = vpop.permute.xlu0 %327
    %v333 = vmul.f32 %v304, %v316
    %v334 = vmul.f32 %v304, %v320
    %v335 = vmul.f32 %v304, %v324
    %v336 = vmul.f32 %v304, %v328
    %v337 = vmul.f32 %v308, %v316
    %v338 = vmul.f32 %v308, %v320
    %v339 = vmul.f32 %v308, %v324
    %v340 = vmul.f32 %v308, %v328
    %349 = vset.pattern.permute.xlu0 0
    %350 = vperm.xlu0 %349, %v333
    %v351 = vpop.permute.xlu0 %350
    %352 = vset.pattern.permute.xlu0 0
    %353 = vperm.xlu0 %352, %v334
    %v354 = vpop.permute.xlu0 %353
    %355 = vset.pattern.permute.xlu0 0
    %356 = vperm.xlu0 %355, %v335
    %v357 = vpop.permute.xlu0 %356
    %358 = vset.pattern.permute.xlu0 0
    %359 = vperm.xlu0 %358, %v336
    %v360 = vpop.permute.xlu0 %359
    %361 = vset.pattern.permute.xlu0 0
    %362 = vperm.xlu0 %361, %v337
    %v363 = vpop.permute.xlu0 %362
    %364 = vset.pattern.permute.xlu0 0
    %365 = vperm.xlu0 %364, %v338
    %v366 = vpop.permute.xlu0 %365
    %367 = vset.pattern.permute.xlu0 0
    %368 = vperm.xlu0 %367, %v339
    %v369 = vpop.permute.xlu0 %368
    %370 = vset.pattern.permute.xlu0 0
    %371 = vperm.xlu0 %370, %v340
    %v372 = vpop.permute.xlu0 %371
    %v373 = vlaneseq
    %v374 = vshrl.u32 %v373, 7
    %v375 = vsub.s32 %v139, %v374
    %v376 = vrot.slane %v351, %v375
    %v377 = vlaneseq
    %v378 = vshrl.u32 %v377, 7
    %v379 = vsub.s32 %v144, %v378
    %v380 = vrot.slane %v354, %v379
    %v381 = vsel %vm149, %v380, %v376
    %v382 = vlaneseq
    %v383 = vshrl.u32 %v382, 7
    %v384 = vsub.s32 %v151, %v383
    %v385 = vrot.slane %v357, %v384
    %v386 = vsel %vm156, %v385, %v381
    %v387 = vlaneseq
    %v388 = vshrl.u32 %v387, 7
    %v389 = vsub.s32 %v158, %v388
    %v390 = vrot.slane %v360, %v389
    %v391 = vsel %vm163, %v390, %v386
    %v392 = vlaneseq
    %v393 = vshrl.u32 %v392, 7
    %v394 = vsub.s32 %v139, %v393
    %v395 = vrot.slane %v363, %v394
    %v396 = vlaneseq
    %v397 = vshrl.u32 %v396, 7
    %v398 = vsub.s32 %v144, %v397
    %v399 = vrot.slane %v366, %v398
    %v400 = vsel %vm149, %v399, %v395
    %v401 = vlaneseq
    %v402 = vshrl.u32 %v401, 7
    %v403 = vsub.s32 %v151, %v402
    %v404 = vrot.slane %v369, %v403
    %v405 = vsel %vm156, %v404, %v400
    %v406 = vlaneseq
    %v407 = vshrl.u32 %v406, 7
    %v408 = vsub.s32 %v158, %v407
    %v409 = vrot.slane %v372, %v408
    %v410 = vsel %vm163, %v409, %v405
    %v411 = vsel %vm184, %v410, %v391
    %v413 = vadd.f32 %v300, %v411
    %v414 = vld [vmem:[%s0] sm:$0x3]
    %v415 = vld [vmem:[%s1] sm:$0x3]
    %v416 = vlaneseq
    %v417 = vshrl.u32 %v416, 7
    %v418 = vsub.s32 0, %v417
    %v419 = vrot.slane %v414, %v418
    %421 = vbcast.lane.b32.xlu0 %v419, 256
    %v422 = vpop.permute.xlu0 %421
    %v423 = vlaneseq
    %v424 = vshrl.u32 %v423, 7
    %v425 = vsub.s32 1, %v424
    %v426 = vrot.slane %v414, %v425
    %428 = vbcast.lane.b32.xlu0 %v426, 256
    %v429 = vpop.permute.xlu0 %428
    %vm430 = vcmp.eq.s32.totalorder %v422, %v139
    %vm431 = vcmp.eq.s32.totalorder %v429, %v139
    %v432 = vsel %vm430, 1, 0
    %v433 = vsel %vm431, 1, 0
    %v434 = vcvt.s32.f32 %v432
    %v435 = vcvt.s32.f32 %v433
    %v436 = vlaneseq
    %v437 = vshrl.u32 %v436, 7
    %v438 = vsub.s32 0, %v437
    %v439 = vrot.slane %v415, %v438
    %441 = vbcast.lane.b32.xlu0 %v439, 256
    %v442 = vpop.permute.xlu0 %441
    %v443 = vlaneseq
    %v444 = vshrl.u32 %v443, 7
    %v445 = vsub.s32 1, %v444
    %v446 = vrot.slane %v415, %v445
    %448 = vbcast.lane.b32.xlu0 %v446, 256
    %v449 = vpop.permute.xlu0 %448
    %v450 = vmul.f32 %v434, %v442
    %v451 = vmul.f32 %v435, %v449
    %vm452 = vcmask 523264
    %v453 = vsel %vm452, %v450, 0.0
    %v454 = vrot.slane %v453, 4
    %v455 = vadd.f32 %v453, %v454
    %v456 = vrot.slane %v455, 2
    %v457 = vadd.f32 %v455, %v456
    %v458 = vrot.slane %v457, 1
    %v459 = vadd.f32 %v457, %v458
    %v460 = vsel %vm452, %v451, 0.0
    %v461 = vrot.slane %v460, 4
    %v462 = vadd.f32 %v460, %v461
    %v463 = vrot.slane %v462, 2
    %v464 = vadd.f32 %v462, %v463
    %v465 = vrot.slane %v464, 1
    %v466 = vadd.f32 %v464, %v465
    %vm467 = vcmask 58368
    %v468 = vsel %vm467, %v415, 0.0
    %469 = vadd.xlane.f32.xlu0 %v468
    %v470 = vpop.xlane.xlu0 %469
    %v471 = vmax.f32 %v470, 1.0
    %v472 = vld [vmem:[%s3] sm:$0xff]
    %v473 = vld [vmem:[%s3 + $0x8] sm:$0xff]
    %v474 = vld [vmem:[%s3 + $0x10] sm:$0xff]
    %v475 = vld [vmem:[%s3 + $0x18] sm:$0xff]
    %v476 = vld [vmem:[%s3 + $0x20] sm:$0xff]
    %v477 = vld [vmem:[%s3 + $0x28] sm:$0xff]
    %v478 = vld [vmem:[%s3 + $0x30] sm:$0xff]
    %v479 = vld [vmem:[%s3 + $0x38] sm:$0xff]
    %v482 = vsel %vm184, %v466, %v459
    %v483 = vsel %vm452, %v482, 0
    %485 = vmatprep.subr.mxu0 0.0
    %486 = vmatpush1.msra.mxu0 %v472
    %487 = vmatprep.subr.mxu0 0.0
    %488 = vmatpush1.msra.mxu0 %v473
    %489 = vmatprep.subr.mxu0 0.0
    %490 = vmatpush1.msra.mxu0 %v474
    %491 = vmatprep.subr.mxu0 0.0
    %492 = vmatpush1.msra.mxu0 %v475
    %493 = vmatprep.subr.mxu0 0.0
    %494 = vmatpush1.msra.mxu0 %v476
    %495 = vmatprep.subr.mxu0 0.0
    %496 = vmatpush1.msra.mxu0 %v477
    %497 = vmatprep.subr.mxu0 0.0
    %498 = vmatpush1.msra.mxu0 %v478
    %499 = vmatprep.subr.mxu0 0.0
    %500 = vmatpush1.msra.mxu0 %v479
    %501 = vmatprep.subr.mxu0 0.0
    %502 = vmatpush1.msra.mxu0 0.0
    %503 = vmatprep.subr.mxu0 0.0
    %504 = vmatpush1.msra.mxu0 0.0
    %505 = vmatprep.subr.mxu0 0.0
    %506 = vmatpush1.msra.mxu0 0.0
    %507 = vmatprep.subr.mxu0 0.0
    %508 = vmatpush1.msra.mxu0 0.0
    %509 = vmatprep.subr.mxu0 0.0
    %510 = vmatpush1.msra.mxu0 0.0
    %511 = vmatprep.subr.mxu0 0.0
    %512 = vmatpush1.msra.mxu0 0.0
    %513 = vmatprep.subr.mxu0 0.0
    %514 = vmatpush1.msra.mxu0 0.0
    %515 = vmatprep.subr.mxu0 0.0
    %516 = vmatpush1.msra.mxu0 0.0
    %517 = vmatprep.subr.mxu0 0.0
    %518 = vmatpush1.msra.mxu0 0.0
    %519 = vmatprep.subr.mxu0 0.0
    %520 = vmatpush1.msra.mxu0 0.0
    %521 = vmatprep.subr.mxu0 0.0
    %522 = vmatpush1.msra.mxu0 0.0
    %523 = vmatprep.subr.mxu0 0.0
    %524 = vmatpush1.msra.mxu0 0.0
    %525 = vmatprep.subr.mxu0 0.0
    %526 = vmatpush1.msra.mxu0 0.0
    %527 = vmatprep.subr.mxu0 0.0
    %528 = vmatpush1.msra.mxu0 0.0
    %529 = vmatprep.subr.mxu0 0.0
    %530 = vmatpush1.msra.mxu0 0.0
    %531 = vmatprep.subr.mxu0 0.0
    %532 = vmatpush1.msra.mxu0 0.0
    %533 = vmatprep.subr.mxu0 0.0
    %534 = vmatpush1.msra.mxu0 0.0
    %535 = vmatprep.subr.mxu0 0.0
    %536 = vmatpush1.msra.mxu0 0.0
    %537 = vmatprep.subr.mxu0 0.0
    %538 = vmatpush1.msra.mxu0 0.0
    %539 = vmatprep.subr.mxu0 0.0
    %540 = vmatpush1.msra.mxu0 0.0
    %541 = vmatprep.subr.mxu0 0.0
    %542 = vmatpush1.msra.mxu0 0.0
    %543 = vmatprep.subr.mxu0 0.0
    %544 = vmatpush1.msra.mxu0 0.0
    %545 = vmatprep.subr.mxu0 0.0
    %546 = vmatpush1.msra.mxu0 0.0
    %547 = vmatprep.subr.mxu0 0.0
    %548 = vmatpush1.msra.mxu0 0.0
    %549 = vmatprep.mubr.f32.mxu0 0.0
    %550 = vmatmul.mubr.f32.gmra.mrb[0].mxu0 %v483
    %v551 = vpop.f32.mrb[0].mxu0
    %v552 = vadd.f32 0.0, %v551
    %v553 = vpop.f32.mrb[0].mxu0
    %554 = vdwg.mxu0
    %v555 = vrcp.pop %v471
    %v556 = vmul.f32 %v552, %v555
    %v557 = vld [vmem:[%s6] sm:$0xff]
    %v558 = vld [vmem:[%s6 + $0x8] sm:$0xff]
    %v559 = vld [vmem:[%s6 + $0x10] sm:$0xff]
    %v560 = vld [vmem:[%s6 + $0x18] sm:$0xff]
    %v561 = vld [vmem:[%s7] sm:$0x1]
    %v563 = vlaneseq
    %v564 = vshrl.u32 %v563, 7
    %v565 = vsub.s32 0, %v564
    %v566 = vrot.slane %v561, %v565
    %vm568 = vcmask 261120
    %v570 = vsel %vm568, %v556, 0
    %572 = vmatprep.subr.mxu0 0.0
    %573 = vmatpush1.msra.mxu0 %v557
    %574 = vmatprep.subr.mxu0 0.0
    %575 = vmatpush1.msra.mxu0 %v558
    %576 = vmatprep.subr.mxu0 0.0
    %577 = vmatpush1.msra.mxu0 %v559
    %578 = vmatprep.subr.mxu0 0.0
    %579 = vmatpush1.msra.mxu0 %v560
    %580 = vmatprep.subr.mxu0 0.0
    %581 = vmatpush1.msra.mxu0 0.0
    %582 = vmatprep.subr.mxu0 0.0
    %583 = vmatpush1.msra.mxu0 0.0
    %584 = vmatprep.subr.mxu0 0.0
    %585 = vmatpush1.msra.mxu0 0.0
    %586 = vmatprep.subr.mxu0 0.0
    %587 = vmatpush1.msra.mxu0 0.0
    %588 = vmatprep.subr.mxu0 0.0
    %589 = vmatpush1.msra.mxu0 0.0
    %590 = vmatprep.subr.mxu0 0.0
    %591 = vmatpush1.msra.mxu0 0.0
    %592 = vmatprep.subr.mxu0 0.0
    %593 = vmatpush1.msra.mxu0 0.0
    %594 = vmatprep.subr.mxu0 0.0
    %595 = vmatpush1.msra.mxu0 0.0
    %596 = vmatprep.subr.mxu0 0.0
    %597 = vmatpush1.msra.mxu0 0.0
    %598 = vmatprep.subr.mxu0 0.0
    %599 = vmatpush1.msra.mxu0 0.0
    %600 = vmatprep.subr.mxu0 0.0
    %601 = vmatpush1.msra.mxu0 0.0
    %602 = vmatprep.subr.mxu0 0.0
    %603 = vmatpush1.msra.mxu0 0.0
    %604 = vmatprep.subr.mxu0 0.0
    %605 = vmatpush1.msra.mxu0 0.0
    %606 = vmatprep.subr.mxu0 0.0
    %607 = vmatpush1.msra.mxu0 0.0
    %608 = vmatprep.subr.mxu0 0.0
    %609 = vmatpush1.msra.mxu0 0.0
    %610 = vmatprep.subr.mxu0 0.0
    %611 = vmatpush1.msra.mxu0 0.0
    %612 = vmatprep.subr.mxu0 0.0
    %613 = vmatpush1.msra.mxu0 0.0
    %614 = vmatprep.subr.mxu0 0.0
    %615 = vmatpush1.msra.mxu0 0.0
    %616 = vmatprep.subr.mxu0 0.0
    %617 = vmatpush1.msra.mxu0 0.0
    %618 = vmatprep.subr.mxu0 0.0
    %619 = vmatpush1.msra.mxu0 0.0
    %620 = vmatprep.subr.mxu0 0.0
    %621 = vmatpush1.msra.mxu0 0.0
    %622 = vmatprep.subr.mxu0 0.0
    %623 = vmatpush1.msra.mxu0 0.0
    %624 = vmatprep.subr.mxu0 0.0
    %625 = vmatpush1.msra.mxu0 0.0
    %626 = vmatprep.subr.mxu0 0.0
    %627 = vmatpush1.msra.mxu0 0.0
    %628 = vmatprep.subr.mxu0 0.0
    %629 = vmatpush1.msra.mxu0 0.0
    %630 = vmatprep.subr.mxu0 0.0
    %631 = vmatpush1.msra.mxu0 0.0
    %632 = vmatprep.subr.mxu0 0.0
    %633 = vmatpush1.msra.mxu0 0.0
    %634 = vmatprep.subr.mxu0 0.0
    %635 = vmatpush1.msra.mxu0 0.0
    %636 = vmatprep.mubr.f32.mxu0 0.0
    %637 = vmatmul.mubr.f32.gmra.mrb[0].mxu0 %v570
    %v638 = vpop.f32.mrb[0].mxu0
    %v639 = vadd.f32 %v566, %v638
    %v640 = vpop.f32.mrb[0].mxu0
    %641 = vdwg.mxu0
    %v642 = vtanh.pop %v639
    %v643 = vld [vmem:[%s8] sm:$0xff]
    %v644 = vld [vmem:[%s8 + $0x8] sm:$0xff]
    %v645 = vld [vmem:[%s8 + $0x10] sm:$0xff]
    %v646 = vld [vmem:[%s8 + $0x18] sm:$0xff]
    %v647 = vld [vmem:[%s8 + $0x20] sm:$0xff]
    %v648 = vld [vmem:[%s8 + $0x28] sm:$0xff]
    %v649 = vld [vmem:[%s8 + $0x30] sm:$0xff]
    %v650 = vld [vmem:[%s8 + $0x38] sm:$0xff]
    %v652 = vsel %vm568, %v642, 0
    %654 = vmatprep.subr.mxu0 0.0
    %655 = vmatpush1.msra.mxu0 %v647
    %656 = vmatprep.subr.mxu0 0.0
    %657 = vmatpush1.msra.mxu0 %v648
    %658 = vmatprep.subr.mxu0 0.0
    %659 = vmatpush1.msra.mxu0 %v649
    %660 = vmatprep.subr.mxu0 0.0
    %661 = vmatpush1.msra.mxu0 %v650
    %662 = vmatprep.subr.mxu0 0.0
    %663 = vmatpush1.msra.mxu0 0.0
    %664 = vmatprep.subr.mxu0 0.0
    %665 = vmatpush1.msra.mxu0 0.0
    %666 = vmatprep.subr.mxu0 0.0
    %667 = vmatpush1.msra.mxu0 0.0
    %668 = vmatprep.subr.mxu0 0.0
    %669 = vmatpush1.msra.mxu0 0.0
    %670 = vmatprep.subr.mxu0 0.0
    %671 = vmatpush1.msra.mxu0 0.0
    %672 = vmatprep.subr.mxu0 0.0
    %673 = vmatpush1.msra.mxu0 0.0
    %674 = vmatprep.subr.mxu0 0.0
    %675 = vmatpush1.msra.mxu0 0.0
    %676 = vmatprep.subr.mxu0 0.0
    %677 = vmatpush1.msra.mxu0 0.0
    %678 = vmatprep.subr.mxu0 0.0
    %679 = vmatpush1.msra.mxu0 0.0
    %680 = vmatprep.subr.mxu0 0.0
    %681 = vmatpush1.msra.mxu0 0.0
    %682 = vmatprep.subr.mxu0 0.0
    %683 = vmatpush1.msra.mxu0 0.0
    %684 = vmatprep.subr.mxu0 0.0
    %685 = vmatpush1.msra.mxu0 0.0
    %686 = vmatprep.subr.mxu0 0.0
    %687 = vmatpush1.msra.mxu0 0.0
    %688 = vmatprep.subr.mxu0 0.0
    %689 = vmatpush1.msra.mxu0 0.0
    %690 = vmatprep.subr.mxu0 0.0
    %691 = vmatpush1.msra.mxu0 0.0
    %692 = vmatprep.subr.mxu0 0.0
    %693 = vmatpush1.msra.mxu0 0.0
    %694 = vmatprep.subr.mxu0 0.0
    %695 = vmatpush1.msra.mxu0 0.0
    %696 = vmatprep.subr.mxu0 0.0
    %697 = vmatpush1.msra.mxu0 0.0
    %698 = vmatprep.subr.mxu0 0.0
    %699 = vmatpush1.msra.mxu0 0.0
    %700 = vmatprep.subr.mxu0 0.0
    %701 = vmatpush1.msra.mxu0 0.0
    %702 = vmatprep.subr.mxu0 0.0
    %703 = vmatpush1.msra.mxu0 0.0
    %704 = vmatprep.subr.mxu0 0.0
    %705 = vmatpush1.msra.mxu0 0.0
    %706 = vmatprep.subr.mxu0 0.0
    %707 = vmatpush1.msra.mxu0 0.0
    %708 = vmatprep.subr.mxu0 0.0
    %709 = vmatpush1.msra.mxu0 0.0
    %710 = vmatprep.subr.mxu0 0.0
    %711 = vmatpush1.msra.mxu0 0.0
    %712 = vmatprep.subr.mxu0 0.0
    %713 = vmatpush1.msra.mxu0 0.0
    %714 = vmatprep.subr.mxu0 0.0
    %715 = vmatpush1.msra.mxu0 0.0
    %716 = vmatprep.subr.mxu0 0.0
    %717 = vmatpush1.msra.mxu0 0.0
    %718 = vmatprep.mubr.f32.mxu0 0.0
    %719 = vmatmul.mubr.f32.gmra.mrb[0].mxu0 %v652
    %v720 = vpop.f32.mrb[0].mxu0
    %v721 = vadd.f32 0.0, %v720
    %v722 = vpop.f32.mrb[0].mxu0
    %723 = vdwg.mxu0
    %v725 = vsel %vm568, %v413, 0
    %727 = vmatprep.subr.mxu0 0.0
    %728 = vmatpush1.msra.mxu0 %v643
    %729 = vmatprep.subr.mxu0 0.0
    %730 = vmatpush1.msra.mxu0 %v644
    %731 = vmatprep.subr.mxu0 0.0
    %732 = vmatpush1.msra.mxu0 %v645
    %733 = vmatprep.subr.mxu0 0.0
    %734 = vmatpush1.msra.mxu0 %v646
    %735 = vmatprep.subr.mxu0 0.0
    %736 = vmatpush1.msra.mxu0 0.0
    %737 = vmatprep.subr.mxu0 0.0
    %738 = vmatpush1.msra.mxu0 0.0
    %739 = vmatprep.subr.mxu0 0.0
    %740 = vmatpush1.msra.mxu0 0.0
    %741 = vmatprep.subr.mxu0 0.0
    %742 = vmatpush1.msra.mxu0 0.0
    %743 = vmatprep.subr.mxu0 0.0
    %744 = vmatpush1.msra.mxu0 0.0
    %745 = vmatprep.subr.mxu0 0.0
    %746 = vmatpush1.msra.mxu0 0.0
    %747 = vmatprep.subr.mxu0 0.0
    %748 = vmatpush1.msra.mxu0 0.0
    %749 = vmatprep.subr.mxu0 0.0
    %750 = vmatpush1.msra.mxu0 0.0
    %751 = vmatprep.subr.mxu0 0.0
    %752 = vmatpush1.msra.mxu0 0.0
    %753 = vmatprep.subr.mxu0 0.0
    %754 = vmatpush1.msra.mxu0 0.0
    %755 = vmatprep.subr.mxu0 0.0
    %756 = vmatpush1.msra.mxu0 0.0
    %757 = vmatprep.subr.mxu0 0.0
    %758 = vmatpush1.msra.mxu0 0.0
    %759 = vmatprep.subr.mxu0 0.0
    %760 = vmatpush1.msra.mxu0 0.0
    %761 = vmatprep.subr.mxu0 0.0
    %762 = vmatpush1.msra.mxu0 0.0
    %763 = vmatprep.subr.mxu0 0.0
    %764 = vmatpush1.msra.mxu0 0.0
    %765 = vmatprep.subr.mxu0 0.0
    %766 = vmatpush1.msra.mxu0 0.0
    %767 = vmatprep.subr.mxu0 0.0
    %768 = vmatpush1.msra.mxu0 0.0
    %769 = vmatprep.subr.mxu0 0.0
    %770 = vmatpush1.msra.mxu0 0.0
    %771 = vmatprep.subr.mxu0 0.0
    %772 = vmatpush1.msra.mxu0 0.0
    %773 = vmatprep.subr.mxu0 0.0
    %774 = vmatpush1.msra.mxu0 0.0
    %775 = vmatprep.subr.mxu0 0.0
    %776 = vmatpush1.msra.mxu0 0.0
    %777 = vmatprep.subr.mxu0 0.0
    %778 = vmatpush1.msra.mxu0 0.0
    %779 = vmatprep.subr.mxu0 0.0
    %780 = vmatpush1.msra.mxu0 0.0
    %781 = vmatprep.subr.mxu0 0.0
    %782 = vmatpush1.msra.mxu0 0.0
    %783 = vmatprep.subr.mxu0 0.0
    %784 = vmatpush1.msra.mxu0 0.0
    %785 = vmatprep.subr.mxu0 0.0
    %786 = vmatpush1.msra.mxu0 0.0
    %787 = vmatprep.subr.mxu0 0.0
    %788 = vmatpush1.msra.mxu0 0.0
    %789 = vmatprep.subr.mxu0 0.0
    %790 = vmatpush1.msra.mxu0 0.0
    %791 = vmatprep.mubr.f32.mxu0 0.0
    %792 = vmatmul.mubr.f32.gmra.mrb[0].mxu0 %v725
    %v793 = vpop.f32.mrb[0].mxu0
    %v794 = vadd.f32 %v721, %v793
    %v795 = vpop.f32.mrb[0].mxu0
    %796 = vdwg.mxu0
    %v797 = vld [vmem:[%s9] sm:$0x1]
    %v799 = vlaneseq
    %v800 = vshrl.u32 %v799, 7
    %v801 = vsub.s32 0, %v800
    %v802 = vrot.slane %v797, %v801
    %v804 = vadd.f32 %v794, %v802
    %vm805 = vcmask 25600
    %v806 = vsel %vm805, %v804, -inf
    %807 = vmax.xlane.f32.xlu0 %v806
    %v808 = vpop.xlane.xlu0 %807
    %v809 = vsub.f32 %v804, %v808
    %v810 = vmul.f32 %v809, 1.442695
    %v811 = vpow.pop %v810
    %v812 = vsel %vm805, %v811, 0.0
    %813 = vadd.xlane.f32.xlu0 %v812
    %v814 = vpop.xlane.xlu0 %813
    %v815 = vrcp.pop %v814
    %v816 = vmul.f32 %v811, %v815
    %818 = vrot.lane.b32.xlu0 %v816, 32
    %v819 = vpop.permute.xlu0 %818
    %v821 = vsel %vm568, %v413, %v819
    %vm822 = vcmask 293888
    %v823 = vsel %vm822, %v821, 0.0
    %824 = vst [vmem:[#allocation2] sm:$0x3] %v823
    // Predicated region
    $region42: #{tpu_custom_call.1} parent=1 // pred_check
      _
    $region43: #{tpu_custom_call.1} parent=1 // pred_check_branch
      %826 = sbr.rel (0) target = $region45
    $region44: #{tpu_custom_call.1} parent=1 // pred_region
      %s828 = ssub.s32 32, 32
      %829 = vsyncadd [#allocation3], %s828
      %s831 = sshll.u32 [#allocation2], 4
      %s832 = int_to_ptr.vmem [resolvable:$true] %s831
      %834 = dma.vmem_to_hbm [thread:$0]  %s832, 32, %s10, [#allocation3]
    $region45: #{tpu_custom_call.1} parent=1 // pred_fallthru
      _
    // Predicated region
    $region46: #{tpu_custom_call.1} parent=1 // pred_check
      _
    $region47: #{tpu_custom_call.1} parent=1 // pred_check_branch
      %836 = sbr.rel (0) target = $region49
    $region48: #{tpu_custom_call.1} parent=1 // pred_region
      %837 = dma.done [#allocation3], 32
    $region49: #{tpu_custom_call.1} parent=1 // pred_fallthru
      _
    %838 = vsyncpa [#allocation3], 1

</llo_original>
